<compile_context>
chip_gen: v5e
topology: v5e:2x2
jax: 0.10.0
libtpu: 0.0.40
codegen_flags: <defaults>
</compile_context>

<pallas_src>
import numpy as np
import jax
import jax.numpy as jnp
from jax.experimental import pallas as pl
from jax.experimental.pallas import tpu as pltpu

LANE = 128


def _round_up(x: int, m: int) -> int:
    return ((x + m - 1) // m) * m


def _pad2d(arr, rows, cols):
    r, c = arr.shape
    return jnp.pad(arr, ((0, rows - r), (0, cols - c)))


# ---------------------------------------------------------------------------
# Kernels
# ---------------------------------------------------------------------------
def xw_kernel(x_ref, w_ref, o_ref):
    # One row tile of X @ W (bf16 operands, f32 MXU accumulation).
    o_ref[...] = jnp.dot(
        x_ref[...], w_ref[...], preferred_element_type=jnp.float32
    ).astype(o_ref.dtype)


def agg_kernel(a_ref, xw_ref, b_ref, o_ref, acc_ref):
    # out[i] = relu( sum_k A_hat[i, k] @ XW[k] + b )
    @pl.when(pl.program_id(1) == 0)
    def _():
        acc_ref[...] = jnp.zeros_like(acc_ref)

    acc_ref[...] += jnp.dot(
        a_ref[...], xw_ref[...], preferred_element_type=jnp.float32
    )

    @pl.when(pl.program_id(1) == pl.num_programs(1) - 1)
    def _():
        o_ref[...] = jnp.maximum(acc_ref[...] + b_ref[...], 0.0).astype(o_ref.dtype)


# ---------------------------------------------------------------------------
# Wrappers
# ---------------------------------------------------------------------------
def _xw(x, w, *, tm):
    n, f = x.shape
    h = w.shape[1]
    return pl.pallas_call(
        xw_kernel,
        out_shape=jax.ShapeDtypeStruct((n, h), jnp.bfloat16),
        grid=(n // tm,),
        in_specs=[
            pl.BlockSpec((tm, f), lambda i: (i, 0)),
            pl.BlockSpec((f, h), lambda i: (0, 0)),
        ],
        out_specs=pl.BlockSpec((tm, h), lambda i: (i, 0)),
        compiler_params=pltpu.CompilerParams(dimension_semantics=("parallel",)),
        cost_estimate=pl.CostEstimate(
            flops=2 * n * f * h,
            transcendentals=0,
            bytes_accessed=2 * (n * f + f * h + n * h),
        ),
    )(x, w)


def _aggregate(a_hat, xw, b, *, out_dtype, tm, tk):
    n = a_hat.shape[0]
    h = xw.shape[1]
    out_itemsize = jnp.dtype(out_dtype).itemsize
    return pl.pallas_call(
        agg_kernel,
        out_shape=jax.ShapeDtypeStruct((n, h), out_dtype),
        grid=(n // tm, n // tk),
        in_specs=[
            pl.BlockSpec((tm, tk), lambda i, k: (i, k)),   # A_hat row/K tile
            pl.BlockSpec((tk, h), lambda i, k: (k, 0)),    # XW K tile
            pl.BlockSpec((1, h), lambda i, k: (0, 0)),     # bias (f32)
        ],
        out_specs=pl.BlockSpec((tm, h), lambda i, k: (i, 0)),
        scratch_shapes=[pltpu.VMEM((tm, h), jnp.float32)],
        compiler_params=pltpu.CompilerParams(
            dimension_semantics=("parallel", "arbitrary")
        ),
        cost_estimate=pl.CostEstimate(
            flops=2 * n * n * h,
            transcendentals=0,
            bytes_accessed=2 * n * n + 2 * n * h + n * h * out_itemsize,
        ),
    )(a_hat, xw, b)


def grace_forward(a_hat, x, w1, b1, w2, b2, *, tm=128, tk=128):
    """2-layer GCN encoder forward pass (GRACE.forward) via Pallas kernels."""
    n, f_in = x.shape
    h1, h2 = w1.shape[1], w2.shape[1]

    # Pad node count to the tile grid and lane-pad hidden widths to 128.
    n_pad = _round_up(n, max(tm, tk))
    h1p = _round_up(h1, LANE)
    h2p = _round_up(h2, LANE)

    a_bf = _pad2d(a_hat, n_pad, n_pad).astype(jnp.bfloat16)
    x_bf = _pad2d(x, n_pad, f_in).astype(jnp.bfloat16)
    w1_bf = _pad2d(w1, f_in, h1p).astype(jnp.bfloat16)
    w2_bf = _pad2d(w2, h1p, h2p).astype(jnp.bfloat16)
    b1p = jnp.pad(b1, (0, h1p - h1)).reshape(1, h1p).astype(jnp.float32)
    b2p = jnp.pad(b2, (0, h2p - h2)).reshape(1, h2p).astype(jnp.float32)

    # Layer 1: h = relu(A_hat @ (X @ W1) + b1)   (kept bf16 for layer-2 MXU)
    xw1 = _xw(x_bf, w1_bf, tm=tm)
    h = _aggregate(a_bf, xw1, b1p, out_dtype=jnp.bfloat16, tm=tm, tk=tk)

    # Layer 2: z = relu(A_hat @ (H @ W2) + b2)
    xw2 = _xw(h, w2_bf, tm=tm)
    z = _aggregate(a_bf, xw2, b2p, out_dtype=jnp.float32, tm=tm, tk=tk)

    return z[:n, :h2]


def build_normalized_adjacency(edge_index, num_nodes):
    """Dense D^-1/2 (A + I) D^-1/2 from a [2, E] edge_index (plain-JAX glue).

    Duplicate edges are collapsed to binary entries (matches the demo graph;
    real GCNConv with duplicated edges would weight them).
    """
    src, dst = edge_index[0], edge_index[1]
    a = jnp.zeros((num_nodes, num_nodes), jnp.float32)
    a = a.at[src, dst].set(1.0)
    a = a.at[dst, src].set(1.0)                      # undirected
    a = a + jnp.eye(num_nodes, dtype=jnp.float32)    # self loops
    deg = jnp.maximum(a.sum(axis=1), 1.0)            # guard isolated nodes
    d_inv_sqrt = 1.0 / jnp.sqrt(deg)
    return a * d_inv_sqrt[:, None] * d_inv_sqrt[None, :]


if __name__ == "__main__":
    # Small shapes consistent with the module: N nodes, in_channels, num_hidden.
    N = 256
    IN_CHANNELS = 64
    NUM_HIDDEN = 32                 # encoder out_channels
    H1 = 2 * NUM_HIDDEN             # first GCN layer width (k=2, non-skip)

    key = jax.random.PRNGKey(0)
    kx, kw1, kb1, kw2, kb2 = jax.random.split(key, 5)

    # Node features.
    x = jax.random.normal(kx, (N, IN_CHANNELS), jnp.float32)

    # Deterministic graph: ring + a few pseudo-random chords.
    ring_src = np.arange(N)
    ring_dst = (ring_src + 1) % N
    chord_src = np.arange(0, N, 4)
    chord_dst = (chord_src * 7 + 3) % N
    edge_index = jnp.asarray(
        np.stack([np.concatenate([ring_src, chord_src]),
                  np.concatenate([ring_dst, chord_dst])]), jnp.int32)

    # Deterministic GCN weights (GCNConv lin weight is [out,in]; use [in,out]).
    w1 = jax.random.normal(kw1, (IN_CHANNELS, H1), jnp.float32) * 0.1
    b1 = jax.random.normal(kb1, (H1,), jnp.float32) * 0.1
    w2 = jax.random.normal(kw2, (H1, NUM_HIDDEN), jnp.float32) * 0.1
    b2 = jax.random.normal(kb2, (NUM_HIDDEN,), jnp.float32) * 0.1

    a_hat = build_normalized_adjacency(edge_index, N)

    out = grace_forward(a_hat, x, w1, b1, w2, b2)
    out = jax.block_until_ready(out)

    # Plain-JAX f32 reference; tolerance loosened for bf16 operands.
    ref_h = jnp.maximum(a_hat @ (x @ w1) + b1, 0.0)
    ref_o = jnp.maximum(a_hat @ (ref_h @ w2) + b2, 0.0)
    np.testing.assert_allclose(np.asarray(out), np.asarray(ref_o),
                               rtol=2e-2, atol=2e-2)

    print("KERNEL_OK")
</pallas_src>

<mosaic_0001>
module attributes {stable_mosaic.version = 11 : i64} {
  func.func @xw_kernel(%arg0: i32, %arg1: memref<128x64xbf16, #tpu.memory_space<vmem>>, %arg2: memref<64x128xbf16, #tpu.memory_space<vmem>>, %arg3: memref<128x128xbf16, #tpu.memory_space<vmem>>) attributes {dimension_semantics = [#tpu.dimension_semantics<parallel>], iteration_bounds = array<i64: 2>, scalar_prefetch = 0 : i64, scratch_operands = 0 : i64, tpu.core_type = #tpu.core_type<tc>, window_params = [{transform_indices = @transform_0, window_bounds = array<i64: 128, 64>}, {pipeline_mode = #tpu.pipeline_mode<synchronous>, transform_indices = @transform_1, window_bounds = array<i64: 64, 128>}, {transform_indices = @transform_2, window_bounds = array<i64: 128, 128>}]} {
    %c0 = arith.constant 0 : index
    %c0_0 = arith.constant 0 : index
    %0 = vector.load %arg1[%c0, %c0_0] : memref<128x64xbf16, #tpu.memory_space<vmem>>, vector<128x64xbf16>
    %c0_1 = arith.constant 0 : index
    %c0_2 = arith.constant 0 : index
    %1 = vector.load %arg2[%c0_1, %c0_2] : memref<64x128xbf16, #tpu.memory_space<vmem>>, vector<64x128xbf16>
    %cst = arith.constant dense<0.000000e+00> : vector<128x128xf32>
    %2 = tpu.matmul %0, %1, %cst {dimension_numbers = #tpu.dot_dimension_numbers<[1], [0], [0], [1], [0, 0, 1, 1], [], []>} : vector<128x64xbf16>, vector<64x128xbf16>, vector<128x128xf32> -> vector<128x128xf32>
    %3 = arith.truncf %2 : vector<128x128xf32> to vector<128x128xbf16>
    %c0_3 = arith.constant 0 : index
    %c0_4 = arith.constant 0 : index
    %4 = vector.load %arg3[%c0_3, %c0_4] : memref<128x128xbf16, #tpu.memory_space<vmem>>, vector<128x128xbf16>
    tpu.vector_store %arg3[%c0_3, %c0_4], %3 {strides = array<i32>} : memref<128x128xbf16, #tpu.memory_space<vmem>>, vector<128x128xbf16>,
    return
  }
  func.func @transform_0(%arg0: i32) -> (i32, i32) {
    %c0_i32 = arith.constant 0 : i32
    %c0_i32_0 = arith.constant 0 : i32
    return %arg0, %c0_i32 : i32, i32
  }
  func.func @transform_1(%arg0: i32) -> (i32, i32) {
    %c0_i32 = arith.constant 0 : i32
    %c0_i32_0 = arith.constant 0 : i32
    %c0_i32_1 = arith.constant 0 : i32
    return %c0_i32, %c0_i32_0 : i32, i32
  }
  func.func @transform_2(%arg0: i32) -> (i32, i32) {
    %c0_i32 = arith.constant 0 : i32
    %c0_i32_0 = arith.constant 0 : i32
    return %arg0, %c0_i32 : i32, i32
  }
}

</mosaic_0001>

<llo_original>
// kernel: tpu_custom_call.1
$region0: #{tpu_custom_call.1}
  #allocation0 [shape = 'u32[]', space=smem, size = 0x4, offset = 0x4, fixed_abs, tag = 'smem constant byte address 0x4 - core index']
  #allocation1 [shape = 'u32[72,128]{1,0:T(1,128)}', space=vmem, size = 0x9000, scoped, tag = 'internal scratch']
  %s0 = inlined_call_operand.vmem [shape: bf16[256,64], index: 0, kind: input, shape index: {}]
  %s1 = inlined_call_operand.vmem [shape: bf16[64,128], index: 1, kind: input, shape index: {}]
  %s2 = inlined_call_operand.hbm [shape: bf16[256,128], index: 2, kind: output, shape index: {}]
  %s3 = sld [smem:[#allocation0]]
  $region41: #{tpu_custom_call.1} parent=0
    _
  %s5 = ssub.s32 1, %s3
  %s6 = scalar_select 0, %s5, %s3
  $region1: #{tpu_custom_call.1} parent=0
    #allocation2 [shape = 'u8[65536]{0}', space=vmem, size = 0x10000, scoped, tag = 'output window, operand 0']
    #allocation3 [shape = 's32[2]{0}', space=sflag, size = 0x8, scoped, tag = 'scoped memory for tpu_custom_call.1']
    %7 = vsyncpa [#allocation3], 0
    %s8 = scalar_lea.sflag [#allocation3], 1
    %9 = vsyncpa %s8, 0
    loop: start=0, step=1, limit=4
    $region2: #{tpu_custom_call.1} parent=1 // loop_pre_header
      _
    $region3: #{tpu_custom_call.1} parent=1 // loop_header
      %s11 = sphi 0, %s15
      %p12 = scmp.ge.s32.totalorder %s11, 4
      %s21 = sphi 0, %s23
      %s24 = sphi 0, %s21
      %s25 = sphi 0, %s24
      %s41 = sphi 0, %s25
      %s45 = sphi 0, %s45
      %s47 = sphi 0, %s45
      %s48 = sphi 0, %s47
      %s62 = sphi 0, %s48
      %s68 = sphi 0, %s70
      %s71 = sphi 0, %s68
      %s72 = sphi 0, %s71
      %s88 = sphi 0, %s72
    $region4: #{tpu_custom_call.1} parent=1 // loop_header_branch
      %14 = sbr.rel (%p12) target = $region8
    $region5: #{tpu_custom_call.1} parent=1 // loop_body
      %s16 = ssub.s32 %s11, 1
      %s17 = ssub.s32 %s11, 2
      %s18 = sadd.s32 %s11, 1
      %s19 = ssub.s32 %s11, %s18
      %p20 = scmp.eq.s32.totalorder %s19, 0
      %s22 = sadd.s32 %s21, 1
      %s23 = scalar_select %p20, %s21, %s22
      %p26 = pneg %p20
      %p27 = scmp.eq.s32.totalorder %s11, 1
      %p28 = por %p26, %p27
      %p29 = scmp.ne.s32.totalorder %s21, %s24
      %p30 = scmp.eq.s32.totalorder %s11, 0
      %p31 = por %p29, %p30
      %p32 = scmp.ne.s32.totalorder %s21, %s24
      %p33 = scmp.eq.s32.totalorder %s16, 1
      %p34 = por %p32, %p33
      %p35 = scmp.ne.s32.totalorder %s24, %s25
      %p36 = scmp.eq.s32.totalorder %s16, 0
      %p37 = por %p35, %p36
      %p38 = scmp.ne.s32.totalorder %s24, %s25
      %p39 = scmp.eq.s32.totalorder %s17, 1
      %p40 = por %p38, %p39
      %p42 = scmp.ne.s32.totalorder %s25, %s41
      %p43 = scmp.eq.s32.totalorder %s17, 0
      %p44 = por %p42, %p43
      %s46 = sadd.s32 %s45, 1
      %p49 = scmp.eq.s32.totalorder %s11, 1
      %p50 = scmp.ne.s32.totalorder %s45, %s47
      %p51 = scmp.eq.s32.totalorder %s11, 0
      %p52 = por %p50, %p51
      %p53 = scmp.ne.s32.totalorder %s45, %s47
      %p54 = scmp.eq.s32.totalorder %s16, 1
      %p55 = por %p53, %p54
      %p56 = scmp.ne.s32.totalorder %s47, %s48
      %p57 = scmp.eq.s32.totalorder %s16, 0
      %p58 = por %p56, %p57
      %p59 = scmp.ne.s32.totalorder %s47, %s48
      %p60 = scmp.eq.s32.totalorder %s17, 1
      %p61 = por %p59, %p60
      %p63 = scmp.ne.s32.totalorder %s48, %s62
      %p64 = scmp.eq.s32.totalorder %s17, 0
      %p65 = por %p63, %p64
      %s66 = ssub.s32 %s11, %s18
      %p67 = scmp.eq.s32.totalorder %s66, 0
      %s69 = sadd.s32 %s68, 1
      %s70 = scalar_select %p67, %s68, %s69
      %p73 = pneg %p67
      %p74 = scmp.eq.s32.totalorder %s11, 1
      %p75 = por %p73, %p74
      %p76 = scmp.ne.s32.totalorder %s68, %s71
      %p77 = scmp.eq.s32.totalorder %s11, 0
      %p78 = por %p76, %p77
      %p79 = scmp.ne.s32.totalorder %s68, %s71
      %p80 = scmp.eq.s32.totalorder %s16, 1
      %p81 = por %p79, %p80
      %p82 = scmp.ne.s32.totalorder %s71, %s72
      %p83 = scmp.eq.s32.totalorder %s16, 0
      %p84 = por %p82, %p83
      %p85 = scmp.ne.s32.totalorder %s71, %s72
      %p86 = scmp.eq.s32.totalorder %s17, 1
      %p87 = por %p85, %p86
      %p89 = scmp.ne.s32.totalorder %s72, %s88
      %p90 = scmp.eq.s32.totalorder %s17, 0
      %p91 = por %p89, %p90
      %p92 = scmp.le.s32.totalorder 1, %s11
      %p93 = scmp.lt.s32.totalorder %s11, 3
      %p94 = pnand %p92, %p93
      %p95 = pneg %p94
      // Predicated region
      $region9: #{tpu_custom_call.1} parent=5 // pred_check
        _
      $region10: #{tpu_custom_call.1} parent=5 // pred_check_branch
        %97 = sbr.rel (%p94) target = $region12
      $region11: #{tpu_custom_call.1} parent=5 // pred_region
        %s98 = ssub.s32 %s11, 1
        // Predicated region
        $region13: #{tpu_custom_call.1} parent=11 // pred_check
          %p99 = pneg %p58
        $region14: #{tpu_custom_call.1} parent=11 // pred_check_branch
          %101 = sbr.rel (%p99) target = $region16
        $region15: #{tpu_custom_call.1} parent=11 // pred_region
          _
        $region16: #{tpu_custom_call.1} parent=11 // pred_fallthru
          _
      $region12: #{tpu_custom_call.1} parent=5 // pred_fallthru
        _
      %p102 = scmp.lt.s32.totalorder %s11, 2
      // Predicated region
      $region17: #{tpu_custom_call.1} parent=5 // pred_check
        %p103 = pneg %p102
      $region18: #{tpu_custom_call.1} parent=5 // pred_check_branch
        %105 = sbr.rel (%p103) target = $region20
      $region19: #{tpu_custom_call.1} parent=5 // pred_region
        // Predicated region
        $region21: #{tpu_custom_call.1} parent=19 // pred_check
          %p106 = pneg %p31
        $region22: #{tpu_custom_call.1} parent=19 // pred_check_branch
          %108 = sbr.rel (%p106) target = $region24
        $region23: #{tpu_custom_call.1} parent=19 // pred_region
          %s109 = smul.u32 16, %s11
          %p110 = scmp.lt.s32.totalorder %s109, 31
          %s111 = scalar_select %p110, %s109, 31
          %s112 = smul.addr %s111, 4
          %s113 = scalar_lea.vmem %s0, %s112
          %s114 = smul.u32 16, %s11
        $region24: #{tpu_custom_call.1} parent=19 // pred_fallthru
          _
      $region20: #{tpu_custom_call.1} parent=5 // pred_fallthru
        _
      %p115 = scmp.le.s32.totalorder 1, %s11
      %p116 = scmp.lt.s32.totalorder %s11, 3
      %p117 = pnand %p115, %p116
      %p118 = pneg %p117
      // Predicated region
      $region25: #{tpu_custom_call.1} parent=5 // pred_check
        _
      $region26: #{tpu_custom_call.1} parent=5 // pred_check_branch
        %120 = sbr.rel (%p117) target = $region28
      $region27: #{tpu_custom_call.1} parent=5 // pred_region
        %s121 = ssub.s32 %s11, 1
        %s122 = smul.u32 16, %s16
        %p123 = scmp.lt.s32.totalorder %s122, 31
        %s124 = scalar_select %p123, %s122, 31
        %s125 = smul.addr %s124, 4
        %s126 = scalar_lea.vmem %s0, %s125
        %p127 = pneg %p37
        %p128 = pneg %p34
        %p129 = pneg %p58
        %p130 = pneg %p55
        %p131 = pneg %p84
        %p132 = pneg %p81
        %s133 = sand.u32 %s71, 1
        %s134 = scalar_lea.sflag [#allocation3], %s133
        %s135 = sand.u32 %s71, 1
        %s136 = smul.addr %s135, 64
        %s137 = scalar_lea.vmem [#allocation2], %s136
        %s138 = smul.u32 16, %s16
        %p139 = scmp.lt.s32.totalorder %s138, 31
        %s140 = scalar_select %p139, %s138, 31
        %s141 = smul.addr %s140, 4
        %s142 = scalar_lea.vmem %s0, %s141
        %s143 = smul.u32 16, %s16
        %s144 = smul.u32 16, %s16
        %v146 = vld [vmem:[%s142] sm:$0xf]
        %v147 = vld [vmem:[%s142 + $0x4] sm:$0xf]
        %v148 = vld [vmem:[%s142 + $0x8] sm:$0xf]
        %v149 = vld [vmem:[%s142 + $0xc] sm:$0xf]
        %v150 = vld [vmem:[%s142 + $0x10] sm:$0xf]
        %v151 = vld [vmem:[%s142 + $0x14] sm:$0xf]
        %v152 = vld [vmem:[%s142 + $0x18] sm:$0xf]
        %v153 = vld [vmem:[%s142 + $0x1c] sm:$0xf]
        %v154 = vld [vmem:[%s142 + $0x20] sm:$0xf]
        %v155 = vld [vmem:[%s142 + $0x24] sm:$0xf]
        %v156 = vld [vmem:[%s142 + $0x28] sm:$0xf]
        %v157 = vld [vmem:[%s142 + $0x2c] sm:$0xf]
        %v158 = vld [vmem:[%s142 + $0x30] sm:$0xf]
        %v159 = vld [vmem:[%s142 + $0x34] sm:$0xf]
        %v160 = vld [vmem:[%s142 + $0x38] sm:$0xf]
        %v161 = vld [vmem:[%s142 + $0x3c] sm:$0xf]
        %v162 = vld [vmem:[%s1] sm:$0xf]
        %v163 = vld [vmem:[%s1 + $0x4] sm:$0xf]
        %v164 = vld [vmem:[%s1 + $0x8] sm:$0xf]
        %v165 = vld [vmem:[%s1 + $0xc] sm:$0xf]
        %v166 = vld [vmem:[%s1 + $0x10] sm:$0xf]
        %v167 = vld [vmem:[%s1 + $0x14] sm:$0xf]
        %v168 = vld [vmem:[%s1 + $0x18] sm:$0xf]
        %v169 = vld [vmem:[%s1 + $0x1c] sm:$0xf]
        %v186 = vunpack.c.l.b16 %v146
        %v187 = vunpack.c.l.b16 %v147
        %v188 = vunpack.c.l.b16 %v148
        %v189 = vunpack.c.l.b16 %v149
        %v190 = vunpack.c.l.b16 %v150
        %v191 = vunpack.c.l.b16 %v151
        %v192 = vunpack.c.l.b16 %v152
        %v193 = vunpack.c.l.b16 %v153
        %v194 = vunpack.c.l.b16 %v154
        %v195 = vunpack.c.l.b16 %v155
        %v196 = vunpack.c.l.b16 %v156
        %v197 = vunpack.c.l.b16 %v157
        %v198 = vunpack.c.l.b16 %v158
        %v199 = vunpack.c.l.b16 %v159
        %v200 = vunpack.c.l.b16 %v160
        %v201 = vunpack.c.l.b16 %v161
        %v202 = vpack.c.b16 %v187, %v186
        %v203 = vpack.c.b16 %v189, %v188
        %v204 = vpack.c.b16 %v191, %v190
        %v205 = vpack.c.b16 %v193, %v192
        %v206 = vpack.c.b16 %v195, %v194
        %v207 = vpack.c.b16 %v197, %v196
        %v208 = vpack.c.b16 %v199, %v198
        %v209 = vpack.c.b16 %v201, %v200
        %v218 = vunpack.c.l.b16 %v162
        %v219 = vunpack.c.l.b16 %v163
        %v220 = vunpack.c.l.b16 %v164
        %v221 = vunpack.c.l.b16 %v165
        %v222 = vunpack.c.l.b16 %v166
        %v223 = vunpack.c.l.b16 %v167
        %v224 = vunpack.c.l.b16 %v168
        %v225 = vunpack.c.l.b16 %v169
        %v226 = vpack.c.b16 %v219, %v218
        %v227 = vpack.c.b16 %v221, %v220
        %v228 = vpack.c.b16 %v223, %v222
        %v229 = vpack.c.b16 %v225, %v224
        %vm234 = vcmask 523264
        %v236 = vsel %vm234, %v202, 0
        %v239 = vsel %vm234, %v203, 0
        %v242 = vsel %vm234, %v204, 0
        %v245 = vsel %vm234, %v205, 0
        %v248 = vsel %vm234, %v206, 0
        %v251 = vsel %vm234, %v207, 0
        %v254 = vsel %vm234, %v208, 0
        %v257 = vsel %vm234, %v209, 0
        %259 = vmatpush.bf16.msra.mxu0 0
        %260 = vmatpush.bf16.msra.mxu0 0
        %261 = vmatpush.bf16.msra.mxu0 0
        %262 = vmatpush.bf16.msra.mxu0 0
        %263 = vmatpush.bf16.msra.mxu0 %v229
        %264 = vmatpush.bf16.msra.mxu0 %v228
        %265 = vmatpush.bf16.msra.mxu0 %v227
        %266 = vmatpush.bf16.msra.mxu0 %v226
        %267 = vmatmul.bf16.gmra.mxu0 %v236
        %v268 = vpop.f32.mrf.mxu0
        %v269 = vadd.f32 0.0, %v268
        %v270 = vpop.f32.mrf.mxu0
        %v271 = vadd.f32 0.0, %v270
        %272 = vmatmul.bf16.gmra.mxu0 %v239
        %v273 = vpop.f32.mrf.mxu0
        %v274 = vadd.f32 0.0, %v273
        %v275 = vpop.f32.mrf.mxu0
        %v276 = vadd.f32 0.0, %v275
        %277 = vmatmul.bf16.gmra.mxu0 %v242
        %v278 = vpop.f32.mrf.mxu0
        %v279 = vadd.f32 0.0, %v278
        %v280 = vpop.f32.mrf.mxu0
        %v281 = vadd.f32 0.0, %v280
        %282 = vmatmul.bf16.gmra.mxu0 %v245
        %v283 = vpop.f32.mrf.mxu0
        %v284 = vadd.f32 0.0, %v283
        %v285 = vpop.f32.mrf.mxu0
        %v286 = vadd.f32 0.0, %v285
        %287 = vmatmul.bf16.gmra.mxu0 %v248
        %v288 = vpop.f32.mrf.mxu0
        %v289 = vadd.f32 0.0, %v288
        %v290 = vpop.f32.mrf.mxu0
        %v291 = vadd.f32 0.0, %v290
        %292 = vmatmul.bf16.gmra.mxu0 %v251
        %v293 = vpop.f32.mrf.mxu0
        %v294 = vadd.f32 0.0, %v293
        %v295 = vpop.f32.mrf.mxu0
        %v296 = vadd.f32 0.0, %v295
        %297 = vmatmul.bf16.gmra.mxu0 %v254
        %v298 = vpop.f32.mrf.mxu0
        %v299 = vadd.f32 0.0, %v298
        %v300 = vpop.f32.mrf.mxu0
        %v301 = vadd.f32 0.0, %v300
        %302 = vmatmul.bf16.gmra.mxu0 %v257
        %v303 = vpop.f32.mrf.mxu0
        %v304 = vadd.f32 0.0, %v303
        %v305 = vpop.f32.mrf.mxu0
        %v306 = vadd.f32 0.0, %v305
        %307 = vdwg.mxu0
        %v308 = vpack.c.bf16 %v269, %v269
        %v309 = vpack.c.bf16 %v271, %v271
        %v310 = vpack.c.bf16 %v274, %v274
        %v311 = vpack.c.bf16 %v276, %v276
        %v312 = vpack.c.bf16 %v279, %v279
        %v313 = vpack.c.bf16 %v281, %v281
        %v314 = vpack.c.bf16 %v284, %v284
        %v315 = vpack.c.bf16 %v286, %v286
        %v316 = vpack.c.bf16 %v289, %v289
        %v317 = vpack.c.bf16 %v291, %v291
        %v318 = vpack.c.bf16 %v294, %v294
        %v319 = vpack.c.bf16 %v296, %v296
        %v320 = vpack.c.bf16 %v299, %v299
        %v321 = vpack.c.bf16 %v301, %v301
        %v322 = vpack.c.bf16 %v304, %v304
        %v323 = vpack.c.bf16 %v306, %v306
        %324 = vst [vmem:[%s137] sm:$0xf] %v308
        %325 = vst [vmem:[%s137 + $0x4] sm:$0xf] %v309
        %326 = vst [vmem:[%s137 + $0x8] sm:$0xf] %v310
        %327 = vst [vmem:[%s137 + $0xc] sm:$0xf] %v311
        %328 = vst [vmem:[%s137 + $0x10] sm:$0xf] %v312
        %329 = vst [vmem:[%s137 + $0x14] sm:$0xf] %v313
        %330 = vst [vmem:[%s137 + $0x18] sm:$0xf] %v314
        %331 = vst [vmem:[%s137 + $0x1c] sm:$0xf] %v315
        %332 = vst [vmem:[%s137 + $0x20] sm:$0xf] %v316
        %333 = vst [vmem:[%s137 + $0x24] sm:$0xf] %v317
        %334 = vst [vmem:[%s137 + $0x28] sm:$0xf] %v318
        %335 = vst [vmem:[%s137 + $0x2c] sm:$0xf] %v319
        %336 = vst [vmem:[%s137 + $0x30] sm:$0xf] %v320
        %337 = vst [vmem:[%s137 + $0x34] sm:$0xf] %v321
        %338 = vst [vmem:[%s137 + $0x38] sm:$0xf] %v322
        %339 = vst [vmem:[%s137 + $0x3c] sm:$0xf] %v323
        %s340 = sand.u32 %s71, 1
        %s341 = scalar_lea.sflag [#allocation3], %s340
        %s342 = sand.u32 %s71, 1
        %s343 = smul.addr %s342, 64
        %s344 = scalar_lea.vmem [#allocation2], %s343
        // Predicated region
        $region29: #{tpu_custom_call.1} parent=27 // pred_check
          %p345 = pneg %p81
        $region30: #{tpu_custom_call.1} parent=27 // pred_check_branch
          %347 = sbr.rel (%p345) target = $region32
        $region31: #{tpu_custom_call.1} parent=27 // pred_region
          %s348 = smul.u32 16, %s16
          %350 = vsyncadd %s341, 0
          %s351 = smul.addr %s348, 4
          %s352 = scalar_lea.hbm %s2, %s351
          %s353 = sshll.u32 %s344, 4
          %s354 = int_to_ptr.vmem [resolvable:$true] %s353
          %s355 = sshll.u32 %s352, 4
          %s356 = int_to_ptr.hbm [resolvable:$true] %s355
          %361 = dma.vmem_to_hbm [thread:$0]  %s354, 1024, %s356, %s341, 64, 64, 4
        $region32: #{tpu_custom_call.1} parent=27 // pred_fallthru
          _
      $region28: #{tpu_custom_call.1} parent=5 // pred_fallthru
        _
      %p362 = scmp.le.s32.totalorder 2, %s11
      // Predicated region
      $region33: #{tpu_custom_call.1} parent=5 // pred_check
        %p363 = pneg %p362
      $region34: #{tpu_custom_call.1} parent=5 // pred_check_branch
        %365 = sbr.rel (%p363) target = $region36
      $region35: #{tpu_custom_call.1} parent=5 // pred_region
        %s366 = ssub.s32 %s11, 2
        // Predicated region
        $region37: #{tpu_custom_call.1} parent=35 // pred_check
          %p367 = pneg %p87
        $region38: #{tpu_custom_call.1} parent=35 // pred_check_branch
          %369 = sbr.rel (%p367) target = $region40
        $region39: #{tpu_custom_call.1} parent=35 // pred_region
          %s370 = sand.u32 %s72, 1
          %s371 = scalar_lea.sflag [#allocation3], %s370
          %s372 = sand.u32 %s72, 1
          %s373 = smul.addr %s372, 64
          %s374 = scalar_lea.vmem [#allocation2], %s373
          %376 = dma.done %s371, 1024
        $region40: #{tpu_custom_call.1} parent=35 // pred_fallthru
          _
      $region36: #{tpu_custom_call.1} parent=5 // pred_fallthru
        _
    $region6: #{tpu_custom_call.1} parent=1 // loop_footer
      %s15 = sadd.s32 1, %s11
    $region7: #{tpu_custom_call.1} parent=1 // loop_footer_branch
      %10 = sbr.rel target = $region3
    $region8: #{tpu_custom_call.1} parent=1 // loop_exit
      _
    %377 = vsyncpa [#allocation3], 1
    %s378 = scalar_lea.sflag [#allocation3], 1
    %379 = vsyncpa %s378, 1

</llo_original>
